<compile_context>
chip_gen: v5e
topology: v5e:2x2
jax: 0.10.0
libtpu: 0.0.40
codegen_flags: <defaults>
</compile_context>

<pallas_src>
import numpy as np
import jax
import jax.numpy as jnp
from jax.experimental import pallas as pl
from jax.experimental.pallas import tpu as pltpu


def _round_up(x, m):
    return ((x + m - 1) // m) * m


def _pick_batch_tile(B, max_tile=256):
    """Largest multiple-of-8 divisor of B up to max_tile, else full B."""
    for tb in range(min(B, max_tile), 7, -1):
        if tb % 8 == 0 and B % tb == 0:
            return tb
    return B


def _build_pool_matrix_and_counts(Ls, Ds):
    """Block-diagonal adaptive-avg-pool 0/1 matrix + exact per-bin counts.

    Bin d of a length-L signal covers rows [floor(d*L/D), ceil((d+1)*L/D)),
    exactly matching F.adaptive_avg_pool1d.  Host-side, Python-int index math
    (no int32 overflow for large L*D).
    """
    L_total, D_total = sum(Ls), sum(Ds)
    W = np.zeros((L_total, D_total), dtype=np.float32)
    counts = np.zeros((1, D_total), dtype=np.float32)
    row_off, col_off = 0, 0
    for L, D in zip(Ls, Ds):
        for d in range(D):
            s = (d * L) // D
            e = -((-(d + 1) * L) // D)          # ceil((d+1)*L/D)
            W[row_off + s:row_off + e, col_off + d] = 1.0
            counts[0, col_off + d] = float(e - s)
        row_off += L
        col_off += D
    return W, counts


def _pool_kernel(x_ref, w_ref, counts_ref, o_ref, acc_ref):
    """Grid = (B tiles [parallel], L tiles [arbitrary reduction])."""
    l = pl.program_id(1)

    @pl.when(l == 0)
    def _():
        acc_ref[...] = jnp.zeros_like(acc_ref)

    # Segment sums on the MXU.  w holds only 0/1 values, so bf16 storage
    # (half the HBM/VMEM traffic) is exact after the cast back to f32; x stays
    # f32 to keep bit-comparable numerics with the torch reference.
    acc_ref[...] += jnp.dot(
        x_ref[...], w_ref[...].astype(jnp.float32),
        preferred_element_type=jnp.float32)

    @pl.when(l == pl.num_programs(1) - 1)
    def _():
        # Single lane-dense full-width store; exact sum-then-divide by the
        # integer-valued f32 counts (matches F.adaptive_avg_pool1d).
        o_ref[...] = (acc_ref[...] / counts_ref[...]).astype(o_ref.dtype)


def myprocess(features, input_dims):
    """Pallas equivalent of Myprocess.forward (one fused kernel, all levels)."""
    assert len(features) == len(input_dims)
    B = int(features[0].shape[0])
    xs = [jnp.asarray(f).reshape(B, -1).astype(jnp.float32) for f in features]
    Ls = [int(x.shape[1]) for x in xs]
    Ds = [int(d) for d in input_dims]
    L_total, D_total = sum(Ls), sum(Ds)

    # Static (shape-only) pooling weights and counts, built once on host.
    W_np, counts_np = _build_pool_matrix_and_counts(Ls, Ds)

    # Tiling: L tiles are lane-aligned (multiple of 128); pad L with zeros so
    # the reduction grid divides evenly (zero rows contribute nothing).
    tl = min(512, _round_up(L_total, 128))
    L_pad = _round_up(L_total, tl)
    tb = _pick_batch_tile(B)

    x = jnp.concatenate(xs, axis=1)
    if L_pad != L_total:
        x = jnp.pad(x, ((0, 0), (0, L_pad - L_total)))
        W_np = np.pad(W_np, ((0, L_pad - L_total), (0, 0)))
    w = jnp.asarray(W_np).astype(jnp.bfloat16)   # 0/1 values -> exact in bf16
    counts = jnp.asarray(counts_np)              # (1, D_total) f32

    grid = (B // tb, L_pad // tl)
    return pl.pallas_call(
        _pool_kernel,
        out_shape=jax.ShapeDtypeStruct((B, D_total), jnp.float32),
        grid_spec=pltpu.PrefetchScalarGridSpec(
            num_scalar_prefetch=0,
            grid=grid,
            in_specs=[
                pl.BlockSpec((tb, tl), lambda b, l: (b, l)),        # x tile
                pl.BlockSpec((tl, D_total), lambda b, l: (l, 0)),   # mask tile
                pl.BlockSpec((1, D_total), lambda b, l: (0, 0)),    # counts (resident)
            ],
            out_specs=pl.BlockSpec((tb, D_total), lambda b, l: (b, 0)),
            scratch_shapes=[pltpu.VMEM((tb, D_total), jnp.float32)],
        ),
        compiler_params=pltpu.CompilerParams(
            # B-parallel (megacore sharding), L is the reduction axis.
            dimension_semantics=("parallel", "arbitrary")),
        # Demo footprint is well under the default scoped-VMEM limit on all
        # chips; for production tiles set vmem_limit_bytes explicitly.
    )(x, w, counts)


def mean_mapper(feature: jax.Array, preprocessing_dim: int) -> jax.Array:
    """Pallas equivalent of a single MeanMapper.forward."""
    return myprocess([feature], [preprocessing_dim])


def _ref_adaptive_avg_pool1d(x2d: np.ndarray, D: int) -> np.ndarray:
    B, L = x2d.shape
    out = np.zeros((B, D), dtype=np.float32)
    for d in range(D):
        s = (d * L) // D
        e = -((-(d + 1) * L) // D)
        out[:, d] = x2d[:, s:e].sum(axis=1) / float(e - s)
    return out


if __name__ == "__main__":
    key = jax.random.PRNGKey(0)
    k1, k2, k3 = jax.random.split(key, 3)

    # Three pyramid levels (NCHW), as patchcore feeds a list of feature maps.
    f1 = jax.random.normal(k1, (2, 4, 16, 16), dtype=jnp.float32)  # L = 1024
    f2 = jax.random.normal(k2, (2, 8, 8, 8), dtype=jnp.float32)    # L = 512
    f3 = jax.random.normal(k3, (2, 2, 8, 8), dtype=jnp.float32)    # L = 128
    input_dims = [64, 48, 16]  # sum = 128 (lane-dense output); 48 !| 512 -> ragged bins

    out = myprocess([f1, f2, f3], input_dims)
    out = jax.block_until_ready(out)
    assert out.shape == (2, sum(input_dims))

    # Pure-numpy reference for correctness.
    ref = np.concatenate(
        [
            _ref_adaptive_avg_pool1d(np.asarray(f).reshape(2, -1), d)
            for f, d in zip([f1, f2, f3], input_dims)
        ],
        axis=1,
    )
    np.testing.assert_allclose(np.asarray(out), ref, rtol=1e-5, atol=1e-5)

    print("KERNEL_OK")
</pallas_src>

<mosaic_0001>
module attributes {stable_mosaic.version = 11 : i64} {
  func.func @_pool_kernel(%arg0: i32, %arg1: i32, %arg2: memref<2x512xf32, #tpu.memory_space<vmem>>, %arg3: memref<512x128xbf16, #tpu.memory_space<vmem>>, %arg4: memref<1x128xf32, #tpu.memory_space<vmem>>, %arg5: memref<2x128xf32, #tpu.memory_space<vmem>>, %arg6: memref<2x128xf32, #tpu.memory_space<vmem>>) attributes {dimension_semantics = [#tpu.dimension_semantics<parallel>, #tpu.dimension_semantics<arbitrary>], iteration_bounds = array<i64: 1, 4>, scalar_prefetch = 0 : i64, scratch_operands = 1 : i64, tpu.core_type = #tpu.core_type<tc>, window_params = [{transform_indices = @transform_0, window_bounds = array<i64: 2, 512>}, {transform_indices = @transform_1, window_bounds = array<i64: 512, 128>}, {pipeline_mode = #tpu.pipeline_mode<synchronous>, transform_indices = @transform_2, window_bounds = array<i64: 1, 128>}, {transform_indices = @transform_3, window_bounds = array<i64: 2, 128>}]} {
    %c0_i32 = arith.constant 0 : i32
    %0 = arith.cmpi eq, %arg1, %c0_i32 : i32
    %1 = arith.extui %0 : i1 to i32
    %c0_i32_0 = arith.constant 0 : i32
    %2 = arith.cmpi ne, %1, %c0_i32_0 : i32
    scf.if %2 {
      %cst_9 = arith.constant 0.000000e+00 : f32
      %13 = vector.broadcast %cst_9 : f32 to vector<2x128xf32>
      %c0_10 = arith.constant 0 : index
      %c0_11 = arith.constant 0 : index
      %14 = vector.load %arg6[%c0_10, %c0_11] : memref<2x128xf32, #tpu.memory_space<vmem>>, vector<2x128xf32>
      tpu.vector_store %arg6[%c0_10, %c0_11], %13 {strides = array<i32>} : memref<2x128xf32, #tpu.memory_space<vmem>>, vector<2x128xf32>,
    } else {
    }
    %c0 = arith.constant 0 : index
    %c0_1 = arith.constant 0 : index
    %3 = vector.load %arg6[%c0, %c0_1] : memref<2x128xf32, #tpu.memory_space<vmem>>, vector<2x128xf32>
    %c0_2 = arith.constant 0 : index
    %c0_3 = arith.constant 0 : index
    %4 = vector.load %arg2[%c0_2, %c0_3] : memref<2x512xf32, #tpu.memory_space<vmem>>, vector<2x512xf32>
    %c0_4 = arith.constant 0 : index
    %c0_5 = arith.constant 0 : index
    %5 = vector.load %arg3[%c0_4, %c0_5] : memref<512x128xbf16, #tpu.memory_space<vmem>>, vector<512x128xbf16>
    %6 = arith.extf %5 : vector<512x128xbf16> to vector<512x128xf32>
    %cst = arith.constant dense<0.000000e+00> : vector<2x128xf32>
    %7 = tpu.matmul %4, %6, %cst {dimension_numbers = #tpu.dot_dimension_numbers<[1], [0], [0], [1], [0, 0, 1, 1], [], []>} : vector<2x512xf32>, vector<512x128xf32>, vector<2x128xf32> -> vector<2x128xf32>
    %8 = arith.addf %3, %7 : vector<2x128xf32>
    %c0_6 = arith.constant 0 : index
    %c0_7 = arith.constant 0 : index
    %9 = vector.load %arg6[%c0_6, %c0_7] : memref<2x128xf32, #tpu.memory_space<vmem>>, vector<2x128xf32>
    tpu.vector_store %arg6[%c0_6, %c0_7], %8 {strides = array<i32>} : memref<2x128xf32, #tpu.memory_space<vmem>>, vector<2x128xf32>,
    %c3_i32 = arith.constant 3 : i32
    %10 = arith.cmpi eq, %arg1, %c3_i32 : i32
    %11 = arith.extui %10 : i1 to i32
    %c0_i32_8 = arith.constant 0 : i32
    %12 = arith.cmpi ne, %11, %c0_i32_8 : i32
    scf.if %12 {
      %c0_9 = arith.constant 0 : index
      %c0_10 = arith.constant 0 : index
      %13 = vector.load %arg6[%c0_9, %c0_10] : memref<2x128xf32, #tpu.memory_space<vmem>>, vector<2x128xf32>
      %c0_11 = arith.constant 0 : index
      %c0_12 = arith.constant 0 : index
      %14 = vector.load %arg4[%c0_11, %c0_12] : memref<1x128xf32, #tpu.memory_space<vmem>>, vector<1x128xf32>
      %15 = vector.broadcast %14 : vector<1x128xf32> to vector<2x128xf32>
      %16 = arith.divf %13, %15 : vector<2x128xf32>
      %c0_13 = arith.constant 0 : index
      %c0_14 = arith.constant 0 : index
      %17 = vector.load %arg5[%c0_13, %c0_14] : memref<2x128xf32, #tpu.memory_space<vmem>>, vector<2x128xf32>
      tpu.vector_store %arg5[%c0_13, %c0_14], %16 {strides = array<i32>} : memref<2x128xf32, #tpu.memory_space<vmem>>, vector<2x128xf32>,
    } else {
    }
    return
  }
  func.func @transform_0(%arg0: i32, %arg1: i32) -> (i32, i32) {
    %c0_i32 = arith.constant 0 : i32
    return %arg0, %arg1 : i32, i32
  }
  func.func @transform_1(%arg0: i32, %arg1: i32) -> (i32, i32) {
    %c0_i32 = arith.constant 0 : i32
    %c0_i32_0 = arith.constant 0 : i32
    return %arg1, %c0_i32 : i32, i32
  }
  func.func @transform_2(%arg0: i32, %arg1: i32) -> (i32, i32) {
    %c0_i32 = arith.constant 0 : i32
    %c0_i32_0 = arith.constant 0 : i32
    %c0_i32_1 = arith.constant 0 : i32
    return %c0_i32, %c0_i32_0 : i32, i32
  }
  func.func @transform_3(%arg0: i32, %arg1: i32) -> (i32, i32) {
    %c0_i32 = arith.constant 0 : i32
    %c0_i32_0 = arith.constant 0 : i32
    return %arg0, %c0_i32 : i32, i32
  }
}

</mosaic_0001>

<llo_original>
// kernel: tpu_custom_call.1
$region0: #{tpu_custom_call.1}
  #allocation0 [shape = 'u32[]', space=smem, size = 0x4, offset = 0x4, fixed_abs, tag = 'smem constant byte address 0x4 - core index']
  #allocation1 [shape = 'u32[72,128]{1,0:T(1,128)}', space=vmem, size = 0x9000, scoped, tag = 'internal scratch']
  #allocation2 [shape = 'f32[2,128]{1,0:T(2,128)}', space=vmem, size = 0x400, scoped, tag = 'scratch operand']
  %s0 = inlined_call_operand.hbm [shape: f32[2,2048], index: 0, kind: input, shape index: {}]
  %s1 = inlined_call_operand.hbm [shape: bf16[2048,128], index: 1, kind: input, shape index: {}]
  %s2 = inlined_call_operand.vmem [shape: f32[1,128], index: 2, kind: input, shape index: {}]
  %s3 = inlined_call_operand.hbm [shape: f32[2,128], index: 3, kind: output, shape index: {}]
  %s4 = sld [smem:[#allocation0]]
  $region61: #{tpu_custom_call.1} parent=0
    _
  %s6 = ssub.s32 1, %s4
  %s7 = scalar_select 0, %s6, %s4
  $region1: #{tpu_custom_call.1} parent=0
    #allocation3 [shape = 'u8[8192]{0}', space=vmem, size = 0x2000, scoped, tag = 'input window, operand 0']
    #allocation4 [shape = 's32[2]{0}', space=sflag, size = 0x8, scoped, tag = 'scoped memory for tpu_custom_call.1']
    #allocation5 [shape = 's32[2]{0}', space=sflag, size = 0x8, scoped, tag = 'scoped memory for tpu_custom_call.1']
    #allocation6 [shape = 'u8[262144]{0}', space=vmem, size = 0x40000, scoped, tag = 'input window, operand 1']
    #allocation7 [shape = 's32[2]{0}', space=sflag, size = 0x8, scoped, tag = 'scoped memory for tpu_custom_call.1']
    #allocation8 [shape = 'u8[1024]{0}', space=vmem, size = 0x400, scoped, tag = 'output window, operand 0, single buffered']
    %8 = vsyncpa [#allocation4], 0
    %s9 = scalar_lea.sflag [#allocation4], 1
    %10 = vsyncpa %s9, 0
    %11 = vsyncpa [#allocation7], 0
    %s12 = scalar_lea.sflag [#allocation7], 1
    %13 = vsyncpa %s12, 0
    %14 = vsyncpa [#allocation5], 0
    loop: start=0, step=1, limit=6
    $region2: #{tpu_custom_call.1} parent=1 // loop_pre_header
      _
    $region3: #{tpu_custom_call.1} parent=1 // loop_header
      %s16 = sphi 0, %s20
      %p17 = scmp.ge.s32.totalorder %s16, 6
      %s23 = sphi 0, %s35
      %s24 = sphi 0, %s31
      %s25 = sphi 0, %s23
      %s26 = sphi 0, %s24
      %s27 = sphi 0, %s25
      %s28 = sphi 0, %s26
      %s40 = sphi 0, %s42
      %s43 = sphi 0, %s40
      %s44 = sphi 0, %s43
      %s60 = sphi 0, %s44
      %s66 = sphi 0, %s68
      %s69 = sphi 0, %s66
      %s70 = sphi 0, %s69
      %s86 = sphi 0, %s70
      %s90 = sphi 0, %s90
      %s92 = sphi 0, %s90
      %s93 = sphi 0, %s92
      %s107 = sphi 0, %s93
      %s113 = sphi 0, %s115
      %s116 = sphi 0, %s113
      %s117 = sphi 0, %s116
      %s133 = sphi 0, %s117
    $region4: #{tpu_custom_call.1} parent=1 // loop_header_branch
      %19 = sbr.rel (%p17) target = $region8
    $region5: #{tpu_custom_call.1} parent=1 // loop_body
      %s21 = ssub.s32 %s16, 1
      %s22 = ssub.s32 %s16, 2
      %s29 = sadd.s32 1, %s24
      %p30 = scmp.ge.s32.totalorder %s29, 4
      %s31 = scalar_select %p30, 0, %s29
      %s32 = sadd.s32 1, %s23
      %s33 = scalar_select %p30, %s32, %s23
      %p34 = scmp.ge.s32.totalorder %s33, 1
      %s35 = scalar_select %p34, 0, %s33
      %s36 = ssub.s32 %s23, %s35
      %s37 = ssub.s32 %s24, %s31
      %s38 = sor.u32 %s36, %s37
      %p39 = scmp.eq.s32.totalorder %s38, 0
      %s41 = sadd.s32 %s40, 1
      %s42 = scalar_select %p39, %s40, %s41
      %p45 = pneg %p39
      %p46 = scmp.eq.s32.totalorder %s16, 3
      %p47 = por %p45, %p46
      %p48 = scmp.ne.s32.totalorder %s40, %s43
      %p49 = scmp.eq.s32.totalorder %s16, 0
      %p50 = por %p48, %p49
      %p51 = scmp.ne.s32.totalorder %s40, %s43
      %p52 = scmp.eq.s32.totalorder %s21, 3
      %p53 = por %p51, %p52
      %p54 = scmp.ne.s32.totalorder %s43, %s44
      %p55 = scmp.eq.s32.totalorder %s21, 0
      %p56 = por %p54, %p55
      %p57 = scmp.ne.s32.totalorder %s43, %s44
      %p58 = scmp.eq.s32.totalorder %s22, 3
      %p59 = por %p57, %p58
      %p61 = scmp.ne.s32.totalorder %s44, %s60
      %p62 = scmp.eq.s32.totalorder %s22, 0
      %p63 = por %p61, %p62
      %s64 = ssub.s32 %s24, %s31
      %p65 = scmp.eq.s32.totalorder %s64, 0
      %s67 = sadd.s32 %s66, 1
      %s68 = scalar_select %p65, %s66, %s67
      %p71 = pneg %p65
      %p72 = scmp.eq.s32.totalorder %s16, 3
      %p73 = por %p71, %p72
      %p74 = scmp.ne.s32.totalorder %s66, %s69
      %p75 = scmp.eq.s32.totalorder %s16, 0
      %p76 = por %p74, %p75
      %p77 = scmp.ne.s32.totalorder %s66, %s69
      %p78 = scmp.eq.s32.totalorder %s21, 3
      %p79 = por %p77, %p78
      %p80 = scmp.ne.s32.totalorder %s69, %s70
      %p81 = scmp.eq.s32.totalorder %s21, 0
      %p82 = por %p80, %p81
      %p83 = scmp.ne.s32.totalorder %s69, %s70
      %p84 = scmp.eq.s32.totalorder %s22, 3
      %p85 = por %p83, %p84
      %p87 = scmp.ne.s32.totalorder %s70, %s86
      %p88 = scmp.eq.s32.totalorder %s22, 0
      %p89 = por %p87, %p88
      %s91 = sadd.s32 %s90, 1
      %p94 = scmp.eq.s32.totalorder %s16, 3
      %p95 = scmp.ne.s32.totalorder %s90, %s92
      %p96 = scmp.eq.s32.totalorder %s16, 0
      %p97 = por %p95, %p96
      %p98 = scmp.ne.s32.totalorder %s90, %s92
      %p99 = scmp.eq.s32.totalorder %s21, 3
      %p100 = por %p98, %p99
      %p101 = scmp.ne.s32.totalorder %s92, %s93
      %p102 = scmp.eq.s32.totalorder %s21, 0
      %p103 = por %p101, %p102
      %p104 = scmp.ne.s32.totalorder %s92, %s93
      %p105 = scmp.eq.s32.totalorder %s22, 3
      %p106 = por %p104, %p105
      %p108 = scmp.ne.s32.totalorder %s93, %s107
      %p109 = scmp.eq.s32.totalorder %s22, 0
      %p110 = por %p108, %p109
      %s111 = ssub.s32 %s23, %s35
      %p112 = scmp.eq.s32.totalorder %s111, 0
      %s114 = sadd.s32 %s113, 1
      %s115 = scalar_select %p112, %s113, %s114
      %p118 = pneg %p112
      %p119 = scmp.eq.s32.totalorder %s16, 3
      %p120 = por %p118, %p119
      %p121 = scmp.ne.s32.totalorder %s113, %s116
      %p122 = scmp.eq.s32.totalorder %s16, 0
      %p123 = por %p121, %p122
      %p124 = scmp.ne.s32.totalorder %s113, %s116
      %p125 = scmp.eq.s32.totalorder %s21, 3
      %p126 = por %p124, %p125
      %p127 = scmp.ne.s32.totalorder %s116, %s117
      %p128 = scmp.eq.s32.totalorder %s21, 0
      %p129 = por %p127, %p128
      %p130 = scmp.ne.s32.totalorder %s116, %s117
      %p131 = scmp.eq.s32.totalorder %s22, 3
      %p132 = por %p130, %p131
      %p134 = scmp.ne.s32.totalorder %s117, %s133
      %p135 = scmp.eq.s32.totalorder %s22, 0
      %p136 = por %p134, %p135
      %p137 = scmp.le.s32.totalorder 1, %s16
      %p138 = scmp.lt.s32.totalorder %s16, 5
      %p139 = pnand %p137, %p138
      %p140 = pneg %p139
      // Predicated region
      $region9: #{tpu_custom_call.1} parent=5 // pred_check
        _
      $region10: #{tpu_custom_call.1} parent=5 // pred_check_branch
        %142 = sbr.rel (%p139) target = $region12
      $region11: #{tpu_custom_call.1} parent=5 // pred_region
        %s143 = ssub.s32 %s16, 1
        // Predicated region
        $region13: #{tpu_custom_call.1} parent=11 // pred_check
          %p144 = pneg %p103
        $region14: #{tpu_custom_call.1} parent=11 // pred_check_branch
          %146 = sbr.rel (%p144) target = $region16
        $region15: #{tpu_custom_call.1} parent=11 // pred_region
          _
        $region16: #{tpu_custom_call.1} parent=11 // pred_fallthru
          _
      $region12: #{tpu_custom_call.1} parent=5 // pred_fallthru
        _
      %p147 = scmp.lt.s32.totalorder %s16, 4
      // Predicated region
      $region17: #{tpu_custom_call.1} parent=5 // pred_check
        %p148 = pneg %p147
      $region18: #{tpu_custom_call.1} parent=5 // pred_check_branch
        %150 = sbr.rel (%p148) target = $region20
      $region19: #{tpu_custom_call.1} parent=5 // pred_region
        // Predicated region
        $region21: #{tpu_custom_call.1} parent=19 // pred_check
          %p151 = pneg %p50
        $region22: #{tpu_custom_call.1} parent=19 // pred_check_branch
          %153 = sbr.rel (%p151) target = $region24
        $region23: #{tpu_custom_call.1} parent=19 // pred_region
          %s154 = sand.u32 %s40, 1
          %s155 = scalar_lea.sflag [#allocation4], %s154
          %s156 = sand.u32 %s40, 1
          %s157 = smul.addr %s156, 8
          %s158 = scalar_lea.vmem [#allocation3], %s157
          %s159 = smul.u32 4, %s24
          %161 = vsyncadd %s155, 0
          %s162 = smul.addr %s23, 16
          %s163 = sadd.s32 %s159, %s162
          %s164 = smul.addr %s163, 2
          %s165 = scalar_lea.hbm %s0, %s164
          %s167 = sshll.u32 %s165, 4
          %s168 = int_to_ptr.hbm [resolvable:$true] %s167
          %s169 = sshll.u32 %s158, 4
          %s170 = int_to_ptr.vmem [resolvable:$true] %s169
          %172 = dma.hbm_to_vmem [thread:$0]  %s168, 128, %s170, %s155
        $region24: #{tpu_custom_call.1} parent=19 // pred_fallthru
          _
        // Predicated region
        $region25: #{tpu_custom_call.1} parent=19 // pred_check
          %p173 = pneg %p76
        $region26: #{tpu_custom_call.1} parent=19 // pred_check_branch
          %175 = sbr.rel (%p173) target = $region28
        $region27: #{tpu_custom_call.1} parent=19 // pred_region
          %s176 = sand.u32 %s66, 1
          %s177 = scalar_lea.sflag [#allocation7], %s176
          %s178 = sand.u32 %s66, 1
          %s179 = smul.addr %s178, 256
          %s180 = scalar_lea.vmem [#allocation6], %s179
          %s181 = smul.u32 64, %s24
          %183 = vsyncadd %s177, 0
          %s184 = smul.addr %s181, 4
          %s185 = scalar_lea.hbm %s1, %s184
          %s186 = sshll.u32 %s185, 4
          %s187 = int_to_ptr.hbm [resolvable:$true] %s186
          %s188 = sshll.u32 %s180, 4
          %s189 = int_to_ptr.vmem [resolvable:$true] %s188
          %194 = dma.hbm_to_vmem [thread:$0]  %s187, 4096, %s189, %s177, 64, 64, 4
        $region28: #{tpu_custom_call.1} parent=19 // pred_fallthru
          _
      $region20: #{tpu_custom_call.1} parent=5 // pred_fallthru
        _
      %p195 = scmp.le.s32.totalorder 1, %s16
      %p196 = scmp.lt.s32.totalorder %s16, 5
      %p197 = pnand %p195, %p196
      %p198 = pneg %p197
      // Predicated region
      $region29: #{tpu_custom_call.1} parent=5 // pred_check
        _
      $region30: #{tpu_custom_call.1} parent=5 // pred_check_branch
        %200 = sbr.rel (%p197) target = $region32
      $region31: #{tpu_custom_call.1} parent=5 // pred_region
        %s201 = ssub.s32 %s16, 1
        %s202 = sand.u32 %s43, 1
        %s203 = scalar_lea.sflag [#allocation4], %s202
        %s204 = sand.u32 %s43, 1
        %s205 = smul.addr %s204, 8
        %s206 = scalar_lea.vmem [#allocation3], %s205
        // Predicated region
        $region33: #{tpu_custom_call.1} parent=31 // pred_check
          %p207 = pneg %p56
        $region34: #{tpu_custom_call.1} parent=31 // pred_check_branch
          %209 = sbr.rel (%p207) target = $region36
        $region35: #{tpu_custom_call.1} parent=31 // pred_region
          %211 = dma.done %s203, 128
        $region36: #{tpu_custom_call.1} parent=31 // pred_fallthru
          _
        %s212 = sand.u32 %s69, 1
        %s213 = scalar_lea.sflag [#allocation7], %s212
        %s214 = sand.u32 %s69, 1
        %s215 = smul.addr %s214, 256
        %s216 = scalar_lea.vmem [#allocation6], %s215
        // Predicated region
        $region37: #{tpu_custom_call.1} parent=31 // pred_check
          %p217 = pneg %p82
        $region38: #{tpu_custom_call.1} parent=31 // pred_check_branch
          %219 = sbr.rel (%p217) target = $region40
        $region39: #{tpu_custom_call.1} parent=31 // pred_region
          %221 = dma.done %s213, 4096
        $region40: #{tpu_custom_call.1} parent=31 // pred_fallthru
          _
        %s222 = sand.u32 %s43, 1
        %s223 = scalar_lea.sflag [#allocation4], %s222
        %s224 = sand.u32 %s43, 1
        %s225 = smul.addr %s224, 8
        %s226 = scalar_lea.vmem [#allocation3], %s225
        %p227 = pneg %p56
        %p228 = pneg %p53
        %s229 = sand.u32 %s69, 1
        %s230 = scalar_lea.sflag [#allocation7], %s229
        %s231 = sand.u32 %s69, 1
        %s232 = smul.addr %s231, 256
        %s233 = scalar_lea.vmem [#allocation6], %s232
        %p234 = pneg %p82
        %p235 = pneg %p79
        %p236 = pneg %p103
        %p237 = pneg %p100
        %p238 = pneg %p129
        %p239 = pneg %p126
        %s240 = smul.u32 4, %s26
        %s241 = smul.u32 64, %s26
        %p242 = scmp.eq.s32.totalorder %s26, 0
        // Predicated region
        $region41: #{tpu_custom_call.1} parent=31 // pred_check
          %p243 = pneg %p242
        $region42: #{tpu_custom_call.1} parent=31 // pred_check_branch
          %245 = sbr.rel (%p243) target = $region44
        $region43: #{tpu_custom_call.1} parent=31 // pred_region
          %246 = vst [vmem:[#allocation2] sm:$0x3] 0.0
        $region44: #{tpu_custom_call.1} parent=31 // pred_fallthru
          _
        %v247 = vld [vmem:[#allocation2] sm:$0x3]
        %v248 = vld [vmem:[%s206] sm:$0xff]
        %v249 = vld [vmem:[%s216] sm:$0xf]
        %v250 = vld [vmem:[%s216 + $0x4] sm:$0xf]
        %v251 = vld [vmem:[%s216 + $0x8] sm:$0xf]
        %v252 = vld [vmem:[%s216 + $0xc] sm:$0xf]
        %v253 = vld [vmem:[%s216 + $0x10] sm:$0xf]
        %v254 = vld [vmem:[%s216 + $0x14] sm:$0xf]
        %v255 = vld [vmem:[%s216 + $0x18] sm:$0xf]
        %v256 = vld [vmem:[%s216 + $0x1c] sm:$0xf]
        %v257 = vld [vmem:[%s216 + $0x20] sm:$0xf]
        %v258 = vld [vmem:[%s216 + $0x24] sm:$0xf]
        %v259 = vld [vmem:[%s216 + $0x28] sm:$0xf]
        %v260 = vld [vmem:[%s216 + $0x2c] sm:$0xf]
        %v261 = vld [vmem:[%s216 + $0x30] sm:$0xf]
        %v262 = vld [vmem:[%s216 + $0x34] sm:$0xf]
        %v263 = vld [vmem:[%s216 + $0x38] sm:$0xf]
        %v264 = vld [vmem:[%s216 + $0x3c] sm:$0xf]
        %v265 = vld [vmem:[%s216 + $0x40] sm:$0xf]
        %v266 = vld [vmem:[%s216 + $0x44] sm:$0xf]
        %v267 = vld [vmem:[%s216 + $0x48] sm:$0xf]
        %v268 = vld [vmem:[%s216 + $0x4c] sm:$0xf]
        %v269 = vld [vmem:[%s216 + $0x50] sm:$0xf]
        %v270 = vld [vmem:[%s216 + $0x54] sm:$0xf]
        %v271 = vld [vmem:[%s216 + $0x58] sm:$0xf]
        %v272 = vld [vmem:[%s216 + $0x5c] sm:$0xf]
        %v273 = vld [vmem:[%s216 + $0x60] sm:$0xf]
        %v274 = vld [vmem:[%s216 + $0x64] sm:$0xf]
        %v275 = vld [vmem:[%s216 + $0x68] sm:$0xf]
        %v276 = vld [vmem:[%s216 + $0x6c] sm:$0xf]
        %v277 = vld [vmem:[%s216 + $0x70] sm:$0xf]
        %v278 = vld [vmem:[%s216 + $0x74] sm:$0xf]
        %v279 = vld [vmem:[%s216 + $0x78] sm:$0xf]
        %v280 = vld [vmem:[%s216 + $0x7c] sm:$0xf]
        %v281 = vld [vmem:[%s216 + $0x80] sm:$0xf]
        %v282 = vld [vmem:[%s216 + $0x84] sm:$0xf]
        %v283 = vld [vmem:[%s216 + $0x88] sm:$0xf]
        %v284 = vld [vmem:[%s216 + $0x8c] sm:$0xf]
        %v285 = vld [vmem:[%s216 + $0x90] sm:$0xf]
        %v286 = vld [vmem:[%s216 + $0x94] sm:$0xf]
        %v287 = vld [vmem:[%s216 + $0x98] sm:$0xf]
        %v288 = vld [vmem:[%s216 + $0x9c] sm:$0xf]
        %v289 = vld [vmem:[%s216 + $0xa0] sm:$0xf]
        %v290 = vld [vmem:[%s216 + $0xa4] sm:$0xf]
        %v291 = vld [vmem:[%s216 + $0xa8] sm:$0xf]
        %v292 = vld [vmem:[%s216 + $0xac] sm:$0xf]
        %v293 = vld [vmem:[%s216 + $0xb0] sm:$0xf]
        %v294 = vld [vmem:[%s216 + $0xb4] sm:$0xf]
        %v295 = vld [vmem:[%s216 + $0xb8] sm:$0xf]
        %v296 = vld [vmem:[%s216 + $0xbc] sm:$0xf]
        %v297 = vld [vmem:[%s216 + $0xc0] sm:$0xf]
        %v298 = vld [vmem:[%s216 + $0xc4] sm:$0xf]
        %v299 = vld [vmem:[%s216 + $0xc8] sm:$0xf]
        %v300 = vld [vmem:[%s216 + $0xcc] sm:$0xf]
        %v301 = vld [vmem:[%s216 + $0xd0] sm:$0xf]
        %v302 = vld [vmem:[%s216 + $0xd4] sm:$0xf]
        %v303 = vld [vmem:[%s216 + $0xd8] sm:$0xf]
        %v304 = vld [vmem:[%s216 + $0xdc] sm:$0xf]
        %v305 = vld [vmem:[%s216 + $0xe0] sm:$0xf]
        %v306 = vld [vmem:[%s216 + $0xe4] sm:$0xf]
        %v307 = vld [vmem:[%s216 + $0xe8] sm:$0xf]
        %v308 = vld [vmem:[%s216 + $0xec] sm:$0xf]
        %v309 = vld [vmem:[%s216 + $0xf0] sm:$0xf]
        %v310 = vld [vmem:[%s216 + $0xf4] sm:$0xf]
        %v311 = vld [vmem:[%s216 + $0xf8] sm:$0xf]
        %v312 = vld [vmem:[%s216 + $0xfc] sm:$0xf]
        %v313 = vunpack.c.l.bf16 %v249
        %v314 = vunpack.c.l.bf16 %v250
        %v315 = vunpack.c.l.bf16 %v251
        %v316 = vunpack.c.l.bf16 %v252
        %v317 = vunpack.c.l.bf16 %v253
        %v318 = vunpack.c.l.bf16 %v254
        %v319 = vunpack.c.l.bf16 %v255
        %v320 = vunpack.c.l.bf16 %v256
        %v321 = vunpack.c.l.bf16 %v257
        %v322 = vunpack.c.l.bf16 %v258
        %v323 = vunpack.c.l.bf16 %v259
        %v324 = vunpack.c.l.bf16 %v260
        %v325 = vunpack.c.l.bf16 %v261
        %v326 = vunpack.c.l.bf16 %v262
        %v327 = vunpack.c.l.bf16 %v263
        %v328 = vunpack.c.l.bf16 %v264
        %v329 = vunpack.c.l.bf16 %v265
        %v330 = vunpack.c.l.bf16 %v266
        %v331 = vunpack.c.l.bf16 %v267
        %v332 = vunpack.c.l.bf16 %v268
        %v333 = vunpack.c.l.bf16 %v269
        %v334 = vunpack.c.l.bf16 %v270
        %v335 = vunpack.c.l.bf16 %v271
        %v336 = vunpack.c.l.bf16 %v272
        %v337 = vunpack.c.l.bf16 %v273
        %v338 = vunpack.c.l.bf16 %v274
        %v339 = vunpack.c.l.bf16 %v275
        %v340 = vunpack.c.l.bf16 %v276
        %v341 = vunpack.c.l.bf16 %v277
        %v342 = vunpack.c.l.bf16 %v278
        %v343 = vunpack.c.l.bf16 %v279
        %v344 = vunpack.c.l.bf16 %v280
        %v345 = vunpack.c.l.bf16 %v281
        %v346 = vunpack.c.l.bf16 %v282
        %v347 = vunpack.c.l.bf16 %v283
        %v348 = vunpack.c.l.bf16 %v284
        %v349 = vunpack.c.l.bf16 %v285
        %v350 = vunpack.c.l.bf16 %v286
        %v351 = vunpack.c.l.bf16 %v287
        %v352 = vunpack.c.l.bf16 %v288
        %v353 = vunpack.c.l.bf16 %v289
        %v354 = vunpack.c.l.bf16 %v290
        %v355 = vunpack.c.l.bf16 %v291
        %v356 = vunpack.c.l.bf16 %v292
        %v357 = vunpack.c.l.bf16 %v293
        %v358 = vunpack.c.l.bf16 %v294
        %v359 = vunpack.c.l.bf16 %v295
        %v360 = vunpack.c.l.bf16 %v296
        %v361 = vunpack.c.l.bf16 %v297
        %v362 = vunpack.c.l.bf16 %v298
        %v363 = vunpack.c.l.bf16 %v299
        %v364 = vunpack.c.l.bf16 %v300
        %v365 = vunpack.c.l.bf16 %v301
        %v366 = vunpack.c.l.bf16 %v302
        %v367 = vunpack.c.l.bf16 %v303
        %v368 = vunpack.c.l.bf16 %v304
        %v369 = vunpack.c.l.bf16 %v305
        %v370 = vunpack.c.l.bf16 %v306
        %v371 = vunpack.c.l.bf16 %v307
        %v372 = vunpack.c.l.bf16 %v308
        %v373 = vunpack.c.l.bf16 %v309
        %v374 = vunpack.c.l.bf16 %v310
        %v375 = vunpack.c.l.bf16 %v311
        %v376 = vunpack.c.l.bf16 %v312
        %378 = vst [vmem:[#allocation1] ss:$4 sm:$0xff] %v248
        %v379 = vld.sshfl [vmem:[#allocation1] sm:$0xff pattern:$0x73625140]
        %v380 = vld.sshfl [vmem:[#allocation1 + $0x8] sm:$0xff pattern:$0x73625140]
        %v381 = vld.sshfl [vmem:[#allocation1 + $0x10] sm:$0xff pattern:$0x73625140]
        %v382 = vld.sshfl [vmem:[#allocation1 + $0x18] sm:$0xff pattern:$0x73625140]
        %387 = vmatpush.msra.mxu0 %v328
        %388 = vmatpush.msra.mxu0 %v327
        %389 = vmatpush.msra.mxu0 %v326
        %390 = vmatpush.msra.mxu0 %v325
        %391 = vmatpush.msra.mxu0 %v324
        %392 = vmatpush.msra.mxu0 %v323
        %393 = vmatpush.msra.mxu0 %v322
        %394 = vmatpush.msra.mxu0 %v321
        %395 = vmatpush.msra.mxu0 %v320
        %396 = vmatpush.msra.mxu0 %v319
        %397 = vmatpush.msra.mxu0 %v318
        %398 = vmatpush.msra.mxu0 %v317
        %399 = vmatpush.msra.mxu0 %v316
        %400 = vmatpush.msra.mxu0 %v315
        %401 = vmatpush.msra.mxu0 %v314
        %402 = vmatpush.msra.mxu0 %v313
        %403 = vmatmul.f32.gmra.mxu0 %v379
        %v404 = vpop.f32.mrf.mxu0
        %v405 = vadd.f32 0.0, %v404
        %406 = vdwg.mxu0
        %407 = vmatpush.msra.mxu0 %v344
        %408 = vmatpush.msra.mxu0 %v343
        %409 = vmatpush.msra.mxu0 %v342
        %410 = vmatpush.msra.mxu0 %v341
        %411 = vmatpush.msra.mxu0 %v340
        %412 = vmatpush.msra.mxu0 %v339
        %413 = vmatpush.msra.mxu0 %v338
        %414 = vmatpush.msra.mxu0 %v337
        %415 = vmatpush.msra.mxu0 %v336
        %416 = vmatpush.msra.mxu0 %v335
        %417 = vmatpush.msra.mxu0 %v334
        %418 = vmatpush.msra.mxu0 %v333
        %419 = vmatpush.msra.mxu0 %v332
        %420 = vmatpush.msra.mxu0 %v331
        %421 = vmatpush.msra.mxu0 %v330
        %422 = vmatpush.msra.mxu0 %v329
        %423 = vmatmul.f32.gmra.mxu0 %v380
        %v424 = vpop.f32.mrf.mxu0
        %v425 = vadd.f32 %v405, %v424
        %426 = vdwg.mxu0
        %427 = vmatpush.msra.mxu0 %v360
        %428 = vmatpush.msra.mxu0 %v359
        %429 = vmatpush.msra.mxu0 %v358
        %430 = vmatpush.msra.mxu0 %v357
        %431 = vmatpush.msra.mxu0 %v356
        %432 = vmatpush.msra.mxu0 %v355
        %433 = vmatpush.msra.mxu0 %v354
        %434 = vmatpush.msra.mxu0 %v353
        %435 = vmatpush.msra.mxu0 %v352
        %436 = vmatpush.msra.mxu0 %v351
        %437 = vmatpush.msra.mxu0 %v350
        %438 = vmatpush.msra.mxu0 %v349
        %439 = vmatpush.msra.mxu0 %v348
        %440 = vmatpush.msra.mxu0 %v347
        %441 = vmatpush.msra.mxu0 %v346
        %442 = vmatpush.msra.mxu0 %v345
        %443 = vmatmul.f32.gmra.mxu0 %v381
        %v444 = vpop.f32.mrf.mxu0
        %v445 = vadd.f32 %v425, %v444
        %446 = vdwg.mxu0
        %447 = vmatpush.msra.mxu0 %v376
        %448 = vmatpush.msra.mxu0 %v375
        %449 = vmatpush.msra.mxu0 %v374
        %450 = vmatpush.msra.mxu0 %v373
        %451 = vmatpush.msra.mxu0 %v372
        %452 = vmatpush.msra.mxu0 %v371
        %453 = vmatpush.msra.mxu0 %v370
        %454 = vmatpush.msra.mxu0 %v369
        %455 = vmatpush.msra.mxu0 %v368
        %456 = vmatpush.msra.mxu0 %v367
        %457 = vmatpush.msra.mxu0 %v366
        %458 = vmatpush.msra.mxu0 %v365
        %459 = vmatpush.msra.mxu0 %v364
        %460 = vmatpush.msra.mxu0 %v363
        %461 = vmatpush.msra.mxu0 %v362
        %462 = vmatpush.msra.mxu0 %v361
        %463 = vmatmul.f32.gmra.mxu0 %v382
        %v464 = vpop.f32.mrf.mxu0
        %v465 = vadd.f32 %v445, %v464
        %466 = vdwg.mxu0
        %v467 = vadd.f32 %v247, %v465
        %468 = vst [vmem:[#allocation2] sm:$0x3] %v467
        %p469 = scmp.eq.s32.totalorder %s26, 3
        // Predicated region
        $region45: #{tpu_custom_call.1} parent=31 // pred_check
          %p470 = pneg %p469
        $region46: #{tpu_custom_call.1} parent=31 // pred_check_branch
          %472 = sbr.rel (%p470) target = $region48
        $region47: #{tpu_custom_call.1} parent=31 // pred_region
          %v473 = vld [vmem:[#allocation2] sm:$0x3]
          %v474 = vld [vmem:[%s2] sm:$0x1]
          %v476 = vperm.slane %v474, 0
          %v478 = vrcp.pop %v476
          %v479 = vmul.f32 %v476, %v478
          %v480 = vsub.f32 1.0, %v479
          %v481 = vmul.f32 %v478, %v480
          %v482 = vadd.f32 %v478, %v481
          %vm483 = vweird.f32 %v476
          %vm484 = vweird.f32 %v478
          %vm485 = vmor %vm483, %vm484
          %v486 = vsel %vm485, %v478, %v482
          %v487 = vand.u32 2147483647, %v476
          %vm488 = vcmp.eq.f32.partialorder %v487, 8.507059e+37
          %v489 = vand.u32 %v476, 2147483648
          %v490 = vor.u32 1.1754944e-38, %v489
          %v491 = vsel %vm488, %v490, %v486
          %v492 = vmul.f32 %v473, %v491
          %493 = vst [vmem:[#allocation8] sm:$0x3] %v492
        $region48: #{tpu_custom_call.1} parent=31 // pred_fallthru
          _
        // Predicated region
        $region49: #{tpu_custom_call.1} parent=31 // pred_check
          %p494 = pneg %p126
        $region50: #{tpu_custom_call.1} parent=31 // pred_check_branch
          %496 = sbr.rel (%p494) target = $region52
        $region51: #{tpu_custom_call.1} parent=31 // pred_region
          %498 = vsyncadd [#allocation5], 0
          %s499 = smul.addr %s25, 2
          %s500 = scalar_lea.hbm %s3, %s499
          %s502 = sshll.u32 [#allocation8], 4
          %s503 = int_to_ptr.vmem [resolvable:$true] %s502
          %s504 = sshll.u32 %s500, 4
          %s505 = int_to_ptr.hbm [resolvable:$true] %s504
          %507 = dma.vmem_to_hbm [thread:$0]  %s503, 32, %s505, [#allocation5]
        $region52: #{tpu_custom_call.1} parent=31 // pred_fallthru
          _
        // Predicated region
        $region53: #{tpu_custom_call.1} parent=31 // pred_check
          %p508 = pneg %p126
        $region54: #{tpu_custom_call.1} parent=31 // pred_check_branch
          %510 = sbr.rel (%p508) target = $region56
        $region55: #{tpu_custom_call.1} parent=31 // pred_region
          %512 = dma.done [#allocation5], 32
        $region56: #{tpu_custom_call.1} parent=31 // pred_fallthru
          _
      $region32: #{tpu_custom_call.1} parent=5 // pred_fallthru
        _
      %p513 = scmp.le.s32.totalorder 2, %s16
      // Predicated region
      $region57: #{tpu_custom_call.1} parent=5 // pred_check
        %p514 = pneg %p513
      $region58: #{tpu_custom_call.1} parent=5 // pred_check_branch
        %516 = sbr.rel (%p514) target = $region60
      $region59: #{tpu_custom_call.1} parent=5 // pred_region
        %s517 = ssub.s32 %s16, 2
      $region60: #{tpu_custom_call.1} parent=5 // pred_fallthru
        _
    $region6: #{tpu_custom_call.1} parent=1 // loop_footer
      %s20 = sadd.s32 1, %s16
    $region7: #{tpu_custom_call.1} parent=1 // loop_footer_branch
      %15 = sbr.rel target = $region3
    $region8: #{tpu_custom_call.1} parent=1 // loop_exit
      _
    %518 = vsyncpa [#allocation4], 1
    %s519 = scalar_lea.sflag [#allocation4], 1
    %520 = vsyncpa %s519, 1
    %521 = vsyncpa [#allocation7], 1
    %s522 = scalar_lea.sflag [#allocation7], 1
    %523 = vsyncpa %s522, 1
    %524 = vsyncpa [#allocation5], 1
    %s525 = scalar_lea.sflag [#allocation5], 1
    %526 = vsyncpa %s525, 1

</llo_original>
